<compile_context>
chip_gen: v6e
topology: v6e:2x2x1
jax: 0.10.0
libtpu: 0.0.40
codegen_flags: <defaults>
</compile_context>

<pallas_src>
import jax
import jax.numpy as jnp
from jax.experimental import pallas as pl
from jax.experimental.pallas import tpu as pltpu

_LANE = 128
_SUBLANE = 8
_TARGET_TILE_BYTES = 2 * 1024 * 1024  # 2 MiB tiles -> ~8 MiB resident (in+out, dbl-buffered)


def _copy_kernel(v_ref, o_ref):
    # NoAttention semantics: output == v.
    o_ref[...] = v_ref[...]


def _no_attention_pallas(v):
    """Identity-on-v routed through a single lane-dense, aliased Pallas copy."""
    shape, dtype = v.shape, v.dtype
    n = v.size
    last = shape[-1]

    # Lane-dense flattening: present a (rows, 128) slab whenever possible so
    # stores are unmasked full-lane vst instead of masked vst.msk.
    if n % _LANE == 0:
        lanes = _LANE
    else:
        lanes = last  # fallback: keep original last dim (full-dim block is layout-legal)
    rows = n // lanes
    v2 = v.reshape(rows, lanes)

    # Tile sizing: biggest multiple-of-8 row count under ~2 MiB per tile.
    bytes_per_row = lanes * jnp.dtype(dtype).itemsize
    tile_rows = min(rows, max(_SUBLANE, _TARGET_TILE_BYTES // bytes_per_row))
    tile_rows -= tile_rows % _SUBLANE
    if tile_rows <= 0 or tile_rows >= rows:
        tile_rows = rows  # single full-array block (always layout-legal)

    grid = (pl.cdiv(rows, tile_rows),)
    spec = pl.BlockSpec((tile_rows, lanes), lambda i: (i, 0))

    out2 = pl.pallas_call(
        _copy_kernel,
        out_shape=jax.ShapeDtypeStruct((rows, lanes), dtype),
        grid=grid,
        in_specs=[spec],
        out_specs=spec,
        input_output_aliases={0: 0},  # let XLA elide / in-place the copy where possible
        compiler_params=pltpu.CompilerParams(
            dimension_semantics=("parallel",),  # row tiles are independent (megacore-friendly)
        ),
    )(v2)
    return out2.reshape(shape)


def no_attention(v, k=None, q=None, mask=None, *, force_kernel=False):
    """Pallas implementation of NoAttention.forward: returns v unchanged.

    k, q, mask are accepted for signature parity but are not read (matching
    the PyTorch module). By default this is a true zero-cost identity; set
    force_kernel=True to route the value through a Pallas copy kernel when a
    kernel boundary is contractually required.
    """
    if not force_kernel:
        return v
    return _no_attention_pallas(v)


if __name__ == "__main__":
    key = jax.random.PRNGKey(0)
    kv, kk, kq = jax.random.split(key, 3)

    B, S, D = 2, 8, 32  # batch, seq, hidden
    v = jax.random.normal(kv, (B, S, D), dtype=jnp.float32)
    k = jax.random.normal(kk, (B, S, D), dtype=jnp.float32)
    q = jax.random.normal(kq, (B, S, D), dtype=jnp.float32)

    # Hot path: pure identity, no kernel launched, no HBM traffic.
    out_fast = no_attention(v, k, q, mask=None)
    assert out_fast is v

    # Kernel-boundary path: lane-dense aliased Pallas copy (run once, block).
    out = no_attention(v, k, q, mask=None, force_kernel=True)
    out = jax.block_until_ready(out)

    assert out.shape == v.shape and out.dtype == v.dtype
    assert jnp.array_equal(out, v), "NoAttention must return v unchanged"
    print("KERNEL_OK")
</pallas_src>

<mosaic_0001>
module attributes {stable_mosaic.version = 11 : i64} {
  func.func @_copy_kernel(%arg0: i32, %arg1: memref<4x128xf32, #tpu.memory_space<vmem>>, %arg2: memref<4x128xf32, #tpu.memory_space<vmem>>) attributes {dimension_semantics = [#tpu.dimension_semantics<parallel>], iteration_bounds = array<i64: 1>, scalar_prefetch = 0 : i64, scratch_operands = 0 : i64, tpu.core_type = #tpu.core_type<tc>, window_params = [{transform_indices = @transform_0, window_bounds = array<i64: 4, 128>}, {transform_indices = @transform_1, window_bounds = array<i64: 4, 128>}]} {
    %c0 = arith.constant 0 : index
    %c0_0 = arith.constant 0 : index
    %0 = vector.load %arg1[%c0, %c0_0] : memref<4x128xf32, #tpu.memory_space<vmem>>, vector<4x128xf32>
    %c0_1 = arith.constant 0 : index
    %c0_2 = arith.constant 0 : index
    %1 = vector.load %arg2[%c0_1, %c0_2] : memref<4x128xf32, #tpu.memory_space<vmem>>, vector<4x128xf32>
    tpu.vector_store %arg2[%c0_1, %c0_2], %0 {strides = array<i32>} : memref<4x128xf32, #tpu.memory_space<vmem>>, vector<4x128xf32>,
    return
  }
  func.func @transform_0(%arg0: i32) -> (i32, i32) {
    %c0_i32 = arith.constant 0 : i32
    %c0_i32_0 = arith.constant 0 : i32
    return %arg0, %c0_i32 : i32, i32
  }
  func.func @transform_1(%arg0: i32) -> (i32, i32) {
    %c0_i32 = arith.constant 0 : i32
    %c0_i32_0 = arith.constant 0 : i32
    return %arg0, %c0_i32 : i32, i32
  }
}

</mosaic_0001>

<llo_original>
// kernel: tpu_custom_call.1
$region0: #{tpu_custom_call.1}
  #allocation0 [shape = 'u32[]', space=smem, size = 0x4, offset = 0x4, fixed_abs, tag = 'smem constant byte address 0x4 - core index']
  #allocation1 [shape = 'u32[144,128]{1,0:T(1,128)}', space=vmem, size = 0x12000, scoped, tag = 'internal scratch']
  %s0 = inlined_call_operand.hbm [shape: f32[4,128], index: 0, kind: input, shape index: {}, may-alias: {0,1}]
  %s1 = inlined_call_operand.hbm [shape: f32[4,128], index: 1, kind: output, shape index: {}, may-alias: {0,1}]
  %s2 = sld [smem:[#allocation0]]
  $region18: #{tpu_custom_call.1} parent=0
    _
  %s4 = ssub.s32 1, %s2
  %s5 = scalar_select 0, %s4, %s2
  $region1: #{tpu_custom_call.1} parent=0
    #allocation2 [shape = 'u8[2048]{0}', space=vmem, size = 0x800, scoped, tag = 'input window, operand 0, single buffered']
    #allocation3 [shape = 's32[1]{0}', space=sflag, size = 0x4, scoped, tag = 'scoped memory for tpu_custom_call.1']
    #allocation4 [shape = 's32[1]{0}', space=sflag, size = 0x4, scoped, tag = 'scoped memory for tpu_custom_call.1']
    #allocation5 [shape = 'u8[2048]{0}', space=vmem, size = 0x800, scoped, tag = 'output window, operand 0, single buffered']
    %6 = vsyncpa [#allocation3], 0
    %7 = vsyncpa [#allocation4], 0
    // Predicated region
    $region2: #{tpu_custom_call.1} parent=1 // pred_check
      _
    $region3: #{tpu_custom_call.1} parent=1 // pred_check_branch
      %9 = sbr.rel (0) target = $region5
    $region4: #{tpu_custom_call.1} parent=1 // pred_region
      %s11 = ssub.s32 64, 64
      %12 = vsyncadd [#allocation3], %s11
      %s14 = sshll.u32 [#allocation2], 4
      %s15 = int_to_ptr.vmem [resolvable:$true] %s14
      %17 = dma.hbm_to_vmem [thread:$0]  %s0, 64, %s15, [#allocation3]
    $region5: #{tpu_custom_call.1} parent=1 // pred_fallthru
      _
    // Predicated region
    $region6: #{tpu_custom_call.1} parent=1 // pred_check
      _
    $region7: #{tpu_custom_call.1} parent=1 // pred_check_branch
      %19 = sbr.rel (0) target = $region9
    $region8: #{tpu_custom_call.1} parent=1 // pred_region
      %20 = dma.done [#allocation3], 64
    $region9: #{tpu_custom_call.1} parent=1 // pred_fallthru
      _
    %v21 = vld [vmem:[#allocation2] sm:$0xf]
    %22 = vst [vmem:[#allocation5] sm:$0xf] %v21
    // Predicated region
    $region10: #{tpu_custom_call.1} parent=1 // pred_check
      _
    $region11: #{tpu_custom_call.1} parent=1 // pred_check_branch
      %24 = sbr.rel (0) target = $region13
    $region12: #{tpu_custom_call.1} parent=1 // pred_region
      %s26 = ssub.s32 64, 64
      %27 = vsyncadd [#allocation4], %s26
      %s29 = sshll.u32 [#allocation5], 4
      %s30 = int_to_ptr.vmem [resolvable:$true] %s29
      %32 = dma.vmem_to_hbm [thread:$0]  %s30, 64, %s1, [#allocation4]
    $region13: #{tpu_custom_call.1} parent=1 // pred_fallthru
      _
    // Predicated region
    $region14: #{tpu_custom_call.1} parent=1 // pred_check
      _
    $region15: #{tpu_custom_call.1} parent=1 // pred_check_branch
      %34 = sbr.rel (0) target = $region17
    $region16: #{tpu_custom_call.1} parent=1 // pred_region
      %35 = dma.done [#allocation4], 64
    $region17: #{tpu_custom_call.1} parent=1 // pred_fallthru
      _
    %36 = vsyncpa [#allocation3], 1
    %37 = vsyncpa [#allocation4], 1

</llo_original>
